<compile_context>
chip_gen: v5e
topology: v5e:2x2
jax: 0.10.0
libtpu: 0.0.40
codegen_flags: <defaults>
</compile_context>

<pallas_src>
import jax
import jax.numpy as jnp
from jax.experimental import pallas as pl
from jax.experimental.pallas import tpu as pltpu

_LANE = 128


def _round_up(n, m):
    return (n + m - 1) // m * m


def _dnet_gauss_kernel(x_ref, w1_ref, b1_ref, w2_ref, b2_ref, w3_ref, b3_ref,
                       o_ref):
    # x is presented transposed: (z_dim, TB) with batch rows on the lane axis,
    # so the per-row result naturally comes out lane-dense.
    xt = x_ref[...]

    # lin1 (+ eval-mode dropout == identity) + relu
    # TODO(synk): training-mode dropout would use pltpu.prng_seed/prng_random_bits.
    h1 = jnp.dot(w1_ref[...], xt, preferred_element_type=jnp.float32) + b1_ref[...]
    h1 = jnp.maximum(h1, 0.0)                       # (Hp, TB)

    # lin2 (+ dropout) + relu
    h2 = jnp.dot(w2_ref[...], h1, preferred_element_type=jnp.float32) + b2_ref[...]
    h2 = jnp.maximum(h2, 0.0)                       # (Hp, TB)

    # lin3: output width is 1, so instead of an N=1 MXU matmul use a VPU
    # multiply + cross-sublane reduce (XLU). Result is lane-dense (1, TB).
    logits = jnp.sum(h2 * w3_ref[...], axis=0, keepdims=True) + b3_ref[0, 0]

    # sigmoid via EUP exp + approximate reciprocal (keeps the epilogue off VALU).
    y = pl.reciprocal(1.0 + jnp.exp(-logits), approx=True)

    o_ref[...] = y[None]                            # (1, 1, TB) lane-dense store


def d_net_gauss_forward(x, params, *, block_batch=1024):
    """x: (B, z_dim) float32.

    params are in PyTorch nn.Linear layout:
      w1 (H, z_dim), b1 (H,), w2 (H, H), b2 (H,), w3 (1, H), b3 (1,)
    Returns (B, 1) float32 probabilities.
    """
    w1, b1, w2, b2, w3, b3 = (params["w1"], params["b1"], params["w2"],
                              params["b2"], params["w3"], params["b3"])
    B, z_dim = x.shape
    hidden = w1.shape[0]
    hp = _round_up(hidden, _LANE)
    ph = hp - hidden

    # Zero-pad the hidden dim to a full lane width. Padded hidden units are
    # exactly 0 after relu and padded w3 entries are 0 -> semantics unchanged.
    w1p = jnp.pad(w1, ((0, ph), (0, 0)))                    # (Hp, z)
    b1p = jnp.pad(b1, (0, ph)).reshape(hp, 1)               # (Hp, 1)
    w2p = jnp.pad(w2, ((0, ph), (0, ph)))                   # (Hp, Hp)
    b2p = jnp.pad(b2, (0, ph)).reshape(hp, 1)               # (Hp, 1)
    w3p = jnp.pad(w3.reshape(-1), (0, ph)).reshape(hp, 1)   # (Hp, 1)
    b3p = b3.reshape(1, 1)                                  # (1, 1) -> SMEM

    # Batch tile: big tiles amortize per-step overhead, but clamp for tiny B.
    tb = _round_up(min(block_batch, _round_up(B, _LANE)), _LANE)
    bp = _round_up(B, tb)
    n_tiles = bp // tb

    # Present x transposed so batch rows live on lanes (lane-dense output slab).
    xt = jnp.pad(x, ((0, bp - B), (0, 0))).T                # (z, Bp)

    out = pl.pallas_call(
        _dnet_gauss_kernel,
        out_shape=jax.ShapeDtypeStruct((n_tiles, 1, tb), jnp.float32),
        grid=(n_tiles,),
        in_specs=[
            pl.BlockSpec((z_dim, tb), lambda i: (0, i)),        # x tile (streamed)
            pl.BlockSpec((hp, z_dim), lambda i: (0, 0)),        # w1 (VMEM-resident)
            pl.BlockSpec((hp, 1), lambda i: (0, 0)),            # b1
            pl.BlockSpec((hp, hp), lambda i: (0, 0)),           # w2
            pl.BlockSpec((hp, 1), lambda i: (0, 0)),            # b2
            pl.BlockSpec((hp, 1), lambda i: (0, 0)),            # w3 as a column
            pl.BlockSpec(memory_space=pltpu.MemorySpace.SMEM),  # b3 scalar
        ],
        out_specs=pl.BlockSpec((1, 1, tb), lambda i: (i, 0, 0)),
        compiler_params=pltpu.CompilerParams(
            dimension_semantics=("parallel",)),
    )(xt, w1p, b1p, w2p, b2p, w3p, b3p)

    return out.reshape(-1)[:B].reshape(B, 1)


def init_params(key, z_dim, hidden_size):
    """nn.Linear-style init U(-1/sqrt(in), 1/sqrt(in)); PyTorch (out, in) layout."""
    ks = jax.random.split(key, 6)

    def lin(kw, kb, fan_in, fan_out):
        bound = 1.0 / jnp.sqrt(jnp.float32(fan_in))
        w = jax.random.uniform(kw, (fan_out, fan_in), jnp.float32, -bound, bound)
        b = jax.random.uniform(kb, (fan_out,), jnp.float32, -bound, bound)
        return w, b

    w1, b1 = lin(ks[0], ks[1], z_dim, hidden_size)
    w2, b2 = lin(ks[2], ks[3], hidden_size, hidden_size)
    w3, b3 = lin(ks[4], ks[5], hidden_size, 1)
    return {"w1": w1, "b1": b1, "w2": w2, "b2": b2, "w3": w3, "b3": b3}


def _reference(x, params):
    # Plain-JAX reference (eval-mode dropout == identity).
    h = jnp.maximum(x @ params["w1"].T + params["b1"], 0.0)
    h = jnp.maximum(h @ params["w2"].T + params["b2"], 0.0)
    return jax.nn.sigmoid(h @ params["w3"].T + params["b3"])


if __name__ == "__main__":
    hidden_size = 64
    z_dim = 8
    batch = 8

    key = jax.random.PRNGKey(0)
    k_params, k_x, k_x2 = jax.random.split(key, 3)

    params = init_params(k_params, z_dim, hidden_size)

    # Small single-tile case.
    x = jax.random.normal(k_x, (batch, z_dim), dtype=jnp.float32)
    out = jax.block_until_ready(d_net_gauss_forward(x, params))
    ref = _reference(x, params)
    assert out.shape == (batch, 1)
    # Tolerance loosened slightly for the approximate (EUP) reciprocal in sigmoid.
    assert jnp.allclose(out, ref, atol=2e-3, rtol=2e-3), float(jnp.max(jnp.abs(out - ref)))

    # Multi-tile case (exercises grid tiling + ragged batch padding).
    x2 = jax.random.normal(k_x2, (300, z_dim), dtype=jnp.float32)
    out2 = jax.block_until_ready(d_net_gauss_forward(x2, params, block_batch=128))
    ref2 = _reference(x2, params)
    assert out2.shape == (300, 1)
    assert jnp.allclose(out2, ref2, atol=2e-3, rtol=2e-3), float(jnp.max(jnp.abs(out2 - ref2)))

    print("KERNEL_OK")
</pallas_src>

<mosaic_0001>
module attributes {stable_mosaic.version = 11 : i64} {
  func.func @_dnet_gauss_kernel(%arg0: i32, %arg1: memref<8x128xf32, #tpu.memory_space<vmem>>, %arg2: memref<128x8xf32, #tpu.memory_space<vmem>>, %arg3: memref<128x1xf32, #tpu.memory_space<vmem>>, %arg4: memref<128x128xf32, #tpu.memory_space<vmem>>, %arg5: memref<128x1xf32, #tpu.memory_space<vmem>>, %arg6: memref<128x1xf32, #tpu.memory_space<vmem>>, %arg7: memref<1x1xf32, #tpu.memory_space<smem>>, %arg8: memref<1x1x128xf32, #tpu.memory_space<vmem>>) attributes {dimension_semantics = [#tpu.dimension_semantics<parallel>], iteration_bounds = array<i64: 1>, scalar_prefetch = 0 : i64, scratch_operands = 0 : i64, tpu.core_type = #tpu.core_type<tc>, window_params = [{transform_indices = @transform_0, window_bounds = array<i64: 8, 128>}, {pipeline_mode = #tpu.pipeline_mode<synchronous>, transform_indices = @transform_1, window_bounds = array<i64: 128, 8>}, {pipeline_mode = #tpu.pipeline_mode<synchronous>, transform_indices = @transform_2, window_bounds = array<i64: 128, 1>}, {pipeline_mode = #tpu.pipeline_mode<synchronous>, transform_indices = @transform_3, window_bounds = array<i64: 128, 128>}, {pipeline_mode = #tpu.pipeline_mode<synchronous>, transform_indices = @transform_4, window_bounds = array<i64: 128, 1>}, {pipeline_mode = #tpu.pipeline_mode<synchronous>, transform_indices = @transform_5, window_bounds = array<i64: 128, 1>}, {transform_indices = @transform_6, window_bounds = array<i64: 1, 1>}, {transform_indices = @transform_7, window_bounds = array<i64: 1, 1, 128>}]} {
    %c0 = arith.constant 0 : index
    %c0_0 = arith.constant 0 : index
    %0 = vector.load %arg1[%c0, %c0_0] : memref<8x128xf32, #tpu.memory_space<vmem>>, vector<8x128xf32>
    %c0_1 = arith.constant 0 : index
    %c0_2 = arith.constant 0 : index
    %1 = vector.load %arg2[%c0_1, %c0_2] : memref<128x8xf32, #tpu.memory_space<vmem>>, vector<128x8xf32>
    %cst = arith.constant dense<0.000000e+00> : vector<128x128xf32>
    %2 = tpu.matmul %1, %0, %cst {dimension_numbers = #tpu.dot_dimension_numbers<[1], [0], [0], [1], [0, 0, 1, 1], [], []>} : vector<128x8xf32>, vector<8x128xf32>, vector<128x128xf32> -> vector<128x128xf32>
    %c0_3 = arith.constant 0 : index
    %c0_4 = arith.constant 0 : index
    %3 = vector.load %arg3[%c0_3, %c0_4] : memref<128x1xf32, #tpu.memory_space<vmem>>, vector<128x1xf32>
    %4 = vector.broadcast %3 : vector<128x1xf32> to vector<128x128xf32>
    %5 = arith.addf %2, %4 : vector<128x128xf32>
    %cst_5 = arith.constant 0.000000e+00 : f32
    %6 = vector.broadcast %cst_5 : f32 to vector<128x128xf32>
    %7 = arith.maximumf %5, %6 : vector<128x128xf32>
    %c0_6 = arith.constant 0 : index
    %c0_7 = arith.constant 0 : index
    %8 = vector.load %arg4[%c0_6, %c0_7] : memref<128x128xf32, #tpu.memory_space<vmem>>, vector<128x128xf32>
    %cst_8 = arith.constant dense<0.000000e+00> : vector<128x128xf32>
    %9 = tpu.matmul %8, %7, %cst_8 {dimension_numbers = #tpu.dot_dimension_numbers<[1], [0], [0], [1], [0, 0, 1, 1], [], []>} : vector<128x128xf32>, vector<128x128xf32>, vector<128x128xf32> -> vector<128x128xf32>
    %c0_9 = arith.constant 0 : index
    %c0_10 = arith.constant 0 : index
    %10 = vector.load %arg5[%c0_9, %c0_10] : memref<128x1xf32, #tpu.memory_space<vmem>>, vector<128x1xf32>
    %11 = vector.broadcast %10 : vector<128x1xf32> to vector<128x128xf32>
    %12 = arith.addf %9, %11 : vector<128x128xf32>
    %cst_11 = arith.constant 0.000000e+00 : f32
    %13 = vector.broadcast %cst_11 : f32 to vector<128x128xf32>
    %14 = arith.maximumf %12, %13 : vector<128x128xf32>
    %c0_12 = arith.constant 0 : index
    %c0_13 = arith.constant 0 : index
    %15 = vector.load %arg6[%c0_12, %c0_13] : memref<128x1xf32, #tpu.memory_space<vmem>>, vector<128x1xf32>
    %16 = vector.broadcast %15 : vector<128x1xf32> to vector<128x128xf32>
    %17 = arith.mulf %14, %16 : vector<128x128xf32>
    %cst_14 = arith.constant dense<0.000000e+00> : vector<128xf32>
    %18 = vector.multi_reduction <add>, %17, %cst_14 [0] : vector<128x128xf32> to vector<128xf32>
    %19 = vector.shape_cast %18 : vector<128xf32> to vector<1x128xf32>
    %c0_15 = arith.constant 0 : index
    %c0_16 = arith.constant 0 : index
    %20 = memref.load %arg7[%c0_15, %c0_16] : memref<1x1xf32, #tpu.memory_space<smem>>
    %21 = vector.broadcast %20 : f32 to vector<1x128xf32>
    %22 = arith.addf %19, %21 : vector<1x128xf32>
    %cst_17 = arith.constant 0.000000e+00 : f32
    %23 = vector.broadcast %cst_17 : f32 to vector<1x128xf32>
    %24 = arith.subf %23, %22 : vector<1x128xf32>
    %25 = math.exp %24 : vector<1x128xf32>
    %cst_18 = arith.constant 1.000000e+00 : f32
    %26 = vector.broadcast %cst_18 : f32 to vector<1x128xf32>
    %27 = arith.addf %26, %25 : vector<1x128xf32>
    %28 = tpu.reciprocal %27 {approx = true} : vector<1x128xf32> -> vector<1x128xf32>
    %29 = vector.shape_cast %28 : vector<1x128xf32> to vector<1x1x128xf32>
    %c0_19 = arith.constant 0 : index
    %c0_20 = arith.constant 0 : index
    %c0_21 = arith.constant 0 : index
    %30 = vector.load %arg8[%c0_19, %c0_20, %c0_21] : memref<1x1x128xf32, #tpu.memory_space<vmem>>, vector<1x1x128xf32>
    tpu.vector_store %arg8[%c0_19, %c0_20, %c0_21], %29 {strides = array<i32>} : memref<1x1x128xf32, #tpu.memory_space<vmem>>, vector<1x1x128xf32>,
    return
  }
  func.func @transform_0(%arg0: i32) -> (i32, i32) {
    %c0_i32 = arith.constant 0 : i32
    %c0_i32_0 = arith.constant 0 : i32
    return %c0_i32, %arg0 : i32, i32
  }
  func.func @transform_1(%arg0: i32) -> (i32, i32) {
    %c0_i32 = arith.constant 0 : i32
    %c0_i32_0 = arith.constant 0 : i32
    %c0_i32_1 = arith.constant 0 : i32
    return %c0_i32, %c0_i32_0 : i32, i32
  }
  func.func @transform_2(%arg0: i32) -> (i32, i32) {
    %c0_i32 = arith.constant 0 : i32
    %c0_i32_0 = arith.constant 0 : i32
    %c0_i32_1 = arith.constant 0 : i32
    return %c0_i32, %c0_i32_0 : i32, i32
  }
  func.func @transform_3(%arg0: i32) -> (i32, i32) {
    %c0_i32 = arith.constant 0 : i32
    %c0_i32_0 = arith.constant 0 : i32
    %c0_i32_1 = arith.constant 0 : i32
    return %c0_i32, %c0_i32_0 : i32, i32
  }
  func.func @transform_4(%arg0: i32) -> (i32, i32) {
    %c0_i32 = arith.constant 0 : i32
    %c0_i32_0 = arith.constant 0 : i32
    %c0_i32_1 = arith.constant 0 : i32
    return %c0_i32, %c0_i32_0 : i32, i32
  }
  func.func @transform_5(%arg0: i32) -> (i32, i32) {
    %c0_i32 = arith.constant 0 : i32
    %c0_i32_0 = arith.constant 0 : i32
    %c0_i32_1 = arith.constant 0 : i32
    return %c0_i32, %c0_i32_0 : i32, i32
  }
  func.func @transform_6(%arg0: i32) -> (i32, i32) {
    %c0_i32 = arith.constant 0 : i32
    %c0_i32_0 = arith.constant 0 : i32
    %c0_i32_1 = arith.constant 0 : i32
    return %c0_i32, %c0_i32_0 : i32, i32
  }
  func.func @transform_7(%arg0: i32) -> (i32, i32, i32) {
    %c0_i32 = arith.constant 0 : i32
    %c0_i32_0 = arith.constant 0 : i32
    %c0_i32_1 = arith.constant 0 : i32
    return %arg0, %c0_i32, %c0_i32_0 : i32, i32, i32
  }
}

</mosaic_0001>

<llo_original>
// kernel: tpu_custom_call.1
$region0: #{tpu_custom_call.1}
  #allocation0 [shape = 'u32[]', space=smem, size = 0x4, offset = 0x4, fixed_abs, tag = 'smem constant byte address 0x4 - core index']
  #allocation1 [shape = 'u32[72,128]{1,0:T(1,128)}', space=vmem, size = 0x9000, scoped, tag = 'internal scratch']
  #allocation2 [shape = 'f32[1,1]{1,0:T(1,128)S(6)}', space=smem, size = 0x200, scoped, tag = 'scoped memory for tpu_custom_call.1']
  %s0 = inlined_call_operand.vmem [shape: f32[8,128], index: 0, kind: input, shape index: {}]
  %s1 = inlined_call_operand.vmem [shape: f32[128,8], index: 1, kind: input, shape index: {}]
  %s2 = inlined_call_operand.vmem [shape: f32[128,1], index: 2, kind: input, shape index: {}]
  %s3 = inlined_call_operand.vmem [shape: f32[128,128], index: 3, kind: input, shape index: {}]
  %s4 = inlined_call_operand.vmem [shape: f32[128,1], index: 4, kind: input, shape index: {}]
  %s5 = inlined_call_operand.vmem [shape: f32[128,1], index: 5, kind: input, shape index: {}]
  %s6 = inlined_call_operand.<no memory space> [shape: f32[1,1], index: 6, kind: input, shape index: {}]
  %s7 = inlined_call_operand.hbm [shape: f32[1,1,128], index: 7, kind: output, shape index: {}]
  %s8 = sld [smem:[#allocation0]]
  $region38: #{tpu_custom_call.1} parent=0
    _
  %s10 = ssub.s32 1, %s8
  %s11 = scalar_select 0, %s10, %s8
  %12 = sst [smem:[#allocation2]] %s6
  $region1: #{tpu_custom_call.1} parent=0
    #allocation3 [shape = 'u8[512]{0}', space=vmem, size = 0x400, scoped, tag = 'output window, operand 0, single buffered']
    #allocation4 [shape = 's32[1]{0}', space=sflag, size = 0x4, scoped, tag = 'scoped memory for tpu_custom_call.1']
    %13 = vsyncpa [#allocation4], 0
    // Predicated region
    $region2: #{tpu_custom_call.1} parent=1 // pred_check
      _
    $region3: #{tpu_custom_call.1} parent=1 // pred_check_branch
      %15 = sbr.rel (0) target = $region5
    $region4: #{tpu_custom_call.1} parent=1 // pred_region
      _
    $region5: #{tpu_custom_call.1} parent=1 // pred_fallthru
      _
    // Predicated region
    $region6: #{tpu_custom_call.1} parent=1 // pred_check
      _
    $region7: #{tpu_custom_call.1} parent=1 // pred_check_branch
      %17 = sbr.rel (0) target = $region9
    $region8: #{tpu_custom_call.1} parent=1 // pred_region
      _
    $region9: #{tpu_custom_call.1} parent=1 // pred_fallthru
      _
    // Predicated region
    $region10: #{tpu_custom_call.1} parent=1 // pred_check
      _
    $region11: #{tpu_custom_call.1} parent=1 // pred_check_branch
      %19 = sbr.rel (0) target = $region13
    $region12: #{tpu_custom_call.1} parent=1 // pred_region
      _
    $region13: #{tpu_custom_call.1} parent=1 // pred_fallthru
      _
    // Predicated region
    $region14: #{tpu_custom_call.1} parent=1 // pred_check
      _
    $region15: #{tpu_custom_call.1} parent=1 // pred_check_branch
      %21 = sbr.rel (0) target = $region17
    $region16: #{tpu_custom_call.1} parent=1 // pred_region
      _
    $region17: #{tpu_custom_call.1} parent=1 // pred_fallthru
      _
    // Predicated region
    $region18: #{tpu_custom_call.1} parent=1 // pred_check
      _
    $region19: #{tpu_custom_call.1} parent=1 // pred_check_branch
      %23 = sbr.rel (0) target = $region21
    $region20: #{tpu_custom_call.1} parent=1 // pred_region
      _
    $region21: #{tpu_custom_call.1} parent=1 // pred_fallthru
      _
    // Predicated region
    $region22: #{tpu_custom_call.1} parent=1 // pred_check
      _
    $region23: #{tpu_custom_call.1} parent=1 // pred_check_branch
      %25 = sbr.rel (0) target = $region25
    $region24: #{tpu_custom_call.1} parent=1 // pred_region
      _
    $region25: #{tpu_custom_call.1} parent=1 // pred_fallthru
      _
    // Predicated region
    $region26: #{tpu_custom_call.1} parent=1 // pred_check
      _
    $region27: #{tpu_custom_call.1} parent=1 // pred_check_branch
      %27 = sbr.rel (0) target = $region29
    $region28: #{tpu_custom_call.1} parent=1 // pred_region
      _
    $region29: #{tpu_custom_call.1} parent=1 // pred_fallthru
      _
    %v28 = vld [vmem:[%s0] sm:$0xff]
    %v29 = vld [vmem:[%s1] sm:$0xff]
    %v30 = vld [vmem:[%s1 + $0x8] sm:$0xff]
    %v31 = vld [vmem:[%s1 + $0x10] sm:$0xff]
    %v32 = vld [vmem:[%s1 + $0x18] sm:$0xff]
    %v33 = vld [vmem:[%s1 + $0x20] sm:$0xff]
    %v34 = vld [vmem:[%s1 + $0x28] sm:$0xff]
    %v35 = vld [vmem:[%s1 + $0x30] sm:$0xff]
    %v36 = vld [vmem:[%s1 + $0x38] sm:$0xff]
    %v37 = vld [vmem:[%s1 + $0x40] sm:$0xff]
    %v38 = vld [vmem:[%s1 + $0x48] sm:$0xff]
    %v39 = vld [vmem:[%s1 + $0x50] sm:$0xff]
    %v40 = vld [vmem:[%s1 + $0x58] sm:$0xff]
    %v41 = vld [vmem:[%s1 + $0x60] sm:$0xff]
    %v42 = vld [vmem:[%s1 + $0x68] sm:$0xff]
    %v43 = vld [vmem:[%s1 + $0x70] sm:$0xff]
    %v44 = vld [vmem:[%s1 + $0x78] sm:$0xff]
    %v45 = vld [vmem:[%s2] sm:$0xff]
    %v46 = vld [vmem:[%s2 + $0x8] sm:$0xff]
    %v47 = vld [vmem:[%s2 + $0x10] sm:$0xff]
    %v48 = vld [vmem:[%s2 + $0x18] sm:$0xff]
    %v49 = vld [vmem:[%s2 + $0x20] sm:$0xff]
    %v50 = vld [vmem:[%s2 + $0x28] sm:$0xff]
    %v51 = vld [vmem:[%s2 + $0x30] sm:$0xff]
    %v52 = vld [vmem:[%s2 + $0x38] sm:$0xff]
    %v53 = vld [vmem:[%s2 + $0x40] sm:$0xff]
    %v54 = vld [vmem:[%s2 + $0x48] sm:$0xff]
    %v55 = vld [vmem:[%s2 + $0x50] sm:$0xff]
    %v56 = vld [vmem:[%s2 + $0x58] sm:$0xff]
    %v57 = vld [vmem:[%s2 + $0x60] sm:$0xff]
    %v58 = vld [vmem:[%s2 + $0x68] sm:$0xff]
    %v59 = vld [vmem:[%s2 + $0x70] sm:$0xff]
    %v60 = vld [vmem:[%s2 + $0x78] sm:$0xff]
    %62 = vset.pattern.permute.xlu0 0
    %63 = vperm.xlu0 %62, %v45
    %v64 = vpop.permute.xlu0 %63
    %67 = vset.pattern.permute.xlu0 0
    %68 = vperm.xlu0 %67, %v46
    %v69 = vpop.permute.xlu0 %68
    %72 = vset.pattern.permute.xlu0 0
    %73 = vperm.xlu0 %72, %v47
    %v74 = vpop.permute.xlu0 %73
    %77 = vset.pattern.permute.xlu0 0
    %78 = vperm.xlu0 %77, %v48
    %v79 = vpop.permute.xlu0 %78
    %82 = vset.pattern.permute.xlu0 0
    %83 = vperm.xlu0 %82, %v49
    %v84 = vpop.permute.xlu0 %83
    %87 = vset.pattern.permute.xlu0 0
    %88 = vperm.xlu0 %87, %v50
    %v89 = vpop.permute.xlu0 %88
    %92 = vset.pattern.permute.xlu0 0
    %93 = vperm.xlu0 %92, %v51
    %v94 = vpop.permute.xlu0 %93
    %97 = vset.pattern.permute.xlu0 0
    %98 = vperm.xlu0 %97, %v52
    %v99 = vpop.permute.xlu0 %98
    %102 = vset.pattern.permute.xlu0 0
    %103 = vperm.xlu0 %102, %v53
    %v104 = vpop.permute.xlu0 %103
    %107 = vset.pattern.permute.xlu0 0
    %108 = vperm.xlu0 %107, %v54
    %v109 = vpop.permute.xlu0 %108
    %112 = vset.pattern.permute.xlu0 0
    %113 = vperm.xlu0 %112, %v55
    %v114 = vpop.permute.xlu0 %113
    %117 = vset.pattern.permute.xlu0 0
    %118 = vperm.xlu0 %117, %v56
    %v119 = vpop.permute.xlu0 %118
    %122 = vset.pattern.permute.xlu0 0
    %123 = vperm.xlu0 %122, %v57
    %v124 = vpop.permute.xlu0 %123
    %127 = vset.pattern.permute.xlu0 0
    %128 = vperm.xlu0 %127, %v58
    %v129 = vpop.permute.xlu0 %128
    %132 = vset.pattern.permute.xlu0 0
    %133 = vperm.xlu0 %132, %v59
    %v134 = vpop.permute.xlu0 %133
    %137 = vset.pattern.permute.xlu0 0
    %138 = vperm.xlu0 %137, %v60
    %v139 = vpop.permute.xlu0 %138
    %vm141 = vcmask 64512
    %v143 = vsel %vm141, %v29, 0
    %v146 = vsel %vm141, %v30, 0
    %v149 = vsel %vm141, %v31, 0
    %v152 = vsel %vm141, %v32, 0
    %v155 = vsel %vm141, %v33, 0
    %v158 = vsel %vm141, %v34, 0
    %v161 = vsel %vm141, %v35, 0
    %v164 = vsel %vm141, %v36, 0
    %v167 = vsel %vm141, %v37, 0
    %v170 = vsel %vm141, %v38, 0
    %v173 = vsel %vm141, %v39, 0
    %v176 = vsel %vm141, %v40, 0
    %v179 = vsel %vm141, %v41, 0
    %v182 = vsel %vm141, %v42, 0
    %v185 = vsel %vm141, %v43, 0
    %v188 = vsel %vm141, %v44, 0
    %190 = vmatpush.msra.mxu0 0.0
    %191 = vmatpush.msra.mxu0 0.0
    %192 = vmatpush.msra.mxu0 0.0
    %193 = vmatpush.msra.mxu0 0.0
    %194 = vmatpush.msra.mxu0 0.0
    %195 = vmatpush.msra.mxu0 0.0
    %196 = vmatpush.msra.mxu0 0.0
    %197 = vmatpush.msra.mxu0 0.0
    %198 = vmatpush.msra.mxu0 0.0
    %199 = vmatpush.msra.mxu0 0.0
    %200 = vmatpush.msra.mxu0 0.0
    %201 = vmatpush.msra.mxu0 0.0
    %202 = vmatpush.msra.mxu0 0.0
    %203 = vmatpush.msra.mxu0 0.0
    %204 = vmatpush.msra.mxu0 0.0
    %205 = vmatpush.msra.mxu0 %v28
    %206 = vmatmul.f32.gmra.mxu0 %v143
    %v207 = vpop.f32.mrf.mxu0
    %v208 = vadd.f32 %v64, %v207
    %209 = vmatmul.f32.gmra.mxu0 %v146
    %v210 = vpop.f32.mrf.mxu0
    %v211 = vadd.f32 %v69, %v210
    %212 = vmatmul.f32.gmra.mxu0 %v149
    %v213 = vpop.f32.mrf.mxu0
    %v214 = vadd.f32 %v74, %v213
    %215 = vmatmul.f32.gmra.mxu0 %v152
    %v216 = vpop.f32.mrf.mxu0
    %v217 = vadd.f32 %v79, %v216
    %218 = vmatmul.f32.gmra.mxu0 %v155
    %v219 = vpop.f32.mrf.mxu0
    %v220 = vadd.f32 %v84, %v219
    %221 = vmatmul.f32.gmra.mxu0 %v158
    %v222 = vpop.f32.mrf.mxu0
    %v223 = vadd.f32 %v89, %v222
    %224 = vmatmul.f32.gmra.mxu0 %v161
    %v225 = vpop.f32.mrf.mxu0
    %v226 = vadd.f32 %v94, %v225
    %227 = vmatmul.f32.gmra.mxu0 %v164
    %v228 = vpop.f32.mrf.mxu0
    %v229 = vadd.f32 %v99, %v228
    %230 = vmatmul.f32.gmra.mxu0 %v167
    %v231 = vpop.f32.mrf.mxu0
    %v232 = vadd.f32 %v104, %v231
    %233 = vmatmul.f32.gmra.mxu0 %v170
    %v234 = vpop.f32.mrf.mxu0
    %v235 = vadd.f32 %v109, %v234
    %236 = vmatmul.f32.gmra.mxu0 %v173
    %v237 = vpop.f32.mrf.mxu0
    %v238 = vadd.f32 %v114, %v237
    %239 = vmatmul.f32.gmra.mxu0 %v176
    %v240 = vpop.f32.mrf.mxu0
    %v241 = vadd.f32 %v119, %v240
    %242 = vmatmul.f32.gmra.mxu0 %v179
    %v243 = vpop.f32.mrf.mxu0
    %v244 = vadd.f32 %v124, %v243
    %245 = vmatmul.f32.gmra.mxu0 %v182
    %v246 = vpop.f32.mrf.mxu0
    %v247 = vadd.f32 %v129, %v246
    %248 = vmatmul.f32.gmra.mxu0 %v185
    %v249 = vpop.f32.mrf.mxu0
    %v250 = vadd.f32 %v134, %v249
    %251 = vmatmul.f32.gmra.mxu0 %v188
    %v252 = vpop.f32.mrf.mxu0
    %v253 = vadd.f32 %v139, %v252
    %254 = vdwg.mxu0
    %v255 = vmax.f32 %v208, 0.0
    %v256 = vmax.f32 %v211, 0.0
    %v257 = vmax.f32 %v214, 0.0
    %v258 = vmax.f32 %v217, 0.0
    %v259 = vmax.f32 %v220, 0.0
    %v260 = vmax.f32 %v223, 0.0
    %v261 = vmax.f32 %v226, 0.0
    %v262 = vmax.f32 %v229, 0.0
    %v263 = vmax.f32 %v232, 0.0
    %v264 = vmax.f32 %v235, 0.0
    %v265 = vmax.f32 %v238, 0.0
    %v266 = vmax.f32 %v241, 0.0
    %v267 = vmax.f32 %v244, 0.0
    %v268 = vmax.f32 %v247, 0.0
    %v269 = vmax.f32 %v250, 0.0
    %v270 = vmax.f32 %v253, 0.0
    %v271 = vld [vmem:[%s3] sm:$0xff]
    %v272 = vld [vmem:[%s3 + $0x8] sm:$0xff]
    %v273 = vld [vmem:[%s3 + $0x10] sm:$0xff]
    %v274 = vld [vmem:[%s3 + $0x18] sm:$0xff]
    %v275 = vld [vmem:[%s3 + $0x20] sm:$0xff]
    %v276 = vld [vmem:[%s3 + $0x28] sm:$0xff]
    %v277 = vld [vmem:[%s3 + $0x30] sm:$0xff]
    %v278 = vld [vmem:[%s3 + $0x38] sm:$0xff]
    %v279 = vld [vmem:[%s3 + $0x40] sm:$0xff]
    %v280 = vld [vmem:[%s3 + $0x48] sm:$0xff]
    %v281 = vld [vmem:[%s3 + $0x50] sm:$0xff]
    %v282 = vld [vmem:[%s3 + $0x58] sm:$0xff]
    %v283 = vld [vmem:[%s3 + $0x60] sm:$0xff]
    %v284 = vld [vmem:[%s3 + $0x68] sm:$0xff]
    %v285 = vld [vmem:[%s3 + $0x70] sm:$0xff]
    %v286 = vld [vmem:[%s3 + $0x78] sm:$0xff]
    %v287 = vld [vmem:[%s4] sm:$0xff]
    %v288 = vld [vmem:[%s4 + $0x8] sm:$0xff]
    %v289 = vld [vmem:[%s4 + $0x10] sm:$0xff]
    %v290 = vld [vmem:[%s4 + $0x18] sm:$0xff]
    %v291 = vld [vmem:[%s4 + $0x20] sm:$0xff]
    %v292 = vld [vmem:[%s4 + $0x28] sm:$0xff]
    %v293 = vld [vmem:[%s4 + $0x30] sm:$0xff]
    %v294 = vld [vmem:[%s4 + $0x38] sm:$0xff]
    %v295 = vld [vmem:[%s4 + $0x40] sm:$0xff]
    %v296 = vld [vmem:[%s4 + $0x48] sm:$0xff]
    %v297 = vld [vmem:[%s4 + $0x50] sm:$0xff]
    %v298 = vld [vmem:[%s4 + $0x58] sm:$0xff]
    %v299 = vld [vmem:[%s4 + $0x60] sm:$0xff]
    %v300 = vld [vmem:[%s4 + $0x68] sm:$0xff]
    %v301 = vld [vmem:[%s4 + $0x70] sm:$0xff]
    %v302 = vld [vmem:[%s4 + $0x78] sm:$0xff]
    %304 = vset.pattern.permute.xlu0 0
    %305 = vperm.xlu0 %304, %v287
    %v306 = vpop.permute.xlu0 %305
    %309 = vset.pattern.permute.xlu0 0
    %310 = vperm.xlu0 %309, %v288
    %v311 = vpop.permute.xlu0 %310
    %314 = vset.pattern.permute.xlu0 0
    %315 = vperm.xlu0 %314, %v289
    %v316 = vpop.permute.xlu0 %315
    %319 = vset.pattern.permute.xlu0 0
    %320 = vperm.xlu0 %319, %v290
    %v321 = vpop.permute.xlu0 %320
    %324 = vset.pattern.permute.xlu0 0
    %325 = vperm.xlu0 %324, %v291
    %v326 = vpop.permute.xlu0 %325
    %329 = vset.pattern.permute.xlu0 0
    %330 = vperm.xlu0 %329, %v292
    %v331 = vpop.permute.xlu0 %330
    %334 = vset.pattern.permute.xlu0 0
    %335 = vperm.xlu0 %334, %v293
    %v336 = vpop.permute.xlu0 %335
    %339 = vset.pattern.permute.xlu0 0
    %340 = vperm.xlu0 %339, %v294
    %v341 = vpop.permute.xlu0 %340
    %344 = vset.pattern.permute.xlu0 0
    %345 = vperm.xlu0 %344, %v295
    %v346 = vpop.permute.xlu0 %345
    %349 = vset.pattern.permute.xlu0 0
    %350 = vperm.xlu0 %349, %v296
    %v351 = vpop.permute.xlu0 %350
    %354 = vset.pattern.permute.xlu0 0
    %355 = vperm.xlu0 %354, %v297
    %v356 = vpop.permute.xlu0 %355
    %359 = vset.pattern.permute.xlu0 0
    %360 = vperm.xlu0 %359, %v298
    %v361 = vpop.permute.xlu0 %360
    %364 = vset.pattern.permute.xlu0 0
    %365 = vperm.xlu0 %364, %v299
    %v366 = vpop.permute.xlu0 %365
    %369 = vset.pattern.permute.xlu0 0
    %370 = vperm.xlu0 %369, %v300
    %v371 = vpop.permute.xlu0 %370
    %374 = vset.pattern.permute.xlu0 0
    %375 = vperm.xlu0 %374, %v301
    %v376 = vpop.permute.xlu0 %375
    %379 = vset.pattern.permute.xlu0 0
    %380 = vperm.xlu0 %379, %v302
    %v381 = vpop.permute.xlu0 %380
    %383 = vmatpush.msra.mxu0 %v270
    %384 = vmatpush.msra.mxu0 %v269
    %385 = vmatpush.msra.mxu0 %v268
    %386 = vmatpush.msra.mxu0 %v267
    %387 = vmatpush.msra.mxu0 %v266
    %388 = vmatpush.msra.mxu0 %v265
    %389 = vmatpush.msra.mxu0 %v264
    %390 = vmatpush.msra.mxu0 %v263
    %391 = vmatpush.msra.mxu0 %v262
    %392 = vmatpush.msra.mxu0 %v261
    %393 = vmatpush.msra.mxu0 %v260
    %394 = vmatpush.msra.mxu0 %v259
    %395 = vmatpush.msra.mxu0 %v258
    %396 = vmatpush.msra.mxu0 %v257
    %397 = vmatpush.msra.mxu0 %v256
    %398 = vmatpush.msra.mxu0 %v255
    %399 = vmatmul.f32.gmra.mxu0 %v271
    %v400 = vpop.f32.mrf.mxu0
    %v401 = vadd.f32 %v306, %v400
    %402 = vmatmul.f32.gmra.mxu0 %v272
    %v403 = vpop.f32.mrf.mxu0
    %v404 = vadd.f32 %v311, %v403
    %405 = vmatmul.f32.gmra.mxu0 %v273
    %v406 = vpop.f32.mrf.mxu0
    %v407 = vadd.f32 %v316, %v406
    %408 = vmatmul.f32.gmra.mxu0 %v274
    %v409 = vpop.f32.mrf.mxu0
    %v410 = vadd.f32 %v321, %v409
    %411 = vmatmul.f32.gmra.mxu0 %v275
    %v412 = vpop.f32.mrf.mxu0
    %v413 = vadd.f32 %v326, %v412
    %414 = vmatmul.f32.gmra.mxu0 %v276
    %v415 = vpop.f32.mrf.mxu0
    %v416 = vadd.f32 %v331, %v415
    %417 = vmatmul.f32.gmra.mxu0 %v277
    %v418 = vpop.f32.mrf.mxu0
    %v419 = vadd.f32 %v336, %v418
    %420 = vmatmul.f32.gmra.mxu0 %v278
    %v421 = vpop.f32.mrf.mxu0
    %v422 = vadd.f32 %v341, %v421
    %423 = vmatmul.f32.gmra.mxu0 %v279
    %v424 = vpop.f32.mrf.mxu0
    %v425 = vadd.f32 %v346, %v424
    %426 = vmatmul.f32.gmra.mxu0 %v280
    %v427 = vpop.f32.mrf.mxu0
    %v428 = vadd.f32 %v351, %v427
    %429 = vmatmul.f32.gmra.mxu0 %v281
    %v430 = vpop.f32.mrf.mxu0
    %v431 = vadd.f32 %v356, %v430
    %432 = vmatmul.f32.gmra.mxu0 %v282
    %v433 = vpop.f32.mrf.mxu0
    %v434 = vadd.f32 %v361, %v433
    %435 = vmatmul.f32.gmra.mxu0 %v283
    %v436 = vpop.f32.mrf.mxu0
    %v437 = vadd.f32 %v366, %v436
    %438 = vmatmul.f32.gmra.mxu0 %v284
    %v439 = vpop.f32.mrf.mxu0
    %v440 = vadd.f32 %v371, %v439
    %441 = vmatmul.f32.gmra.mxu0 %v285
    %v442 = vpop.f32.mrf.mxu0
    %v443 = vadd.f32 %v376, %v442
    %444 = vmatmul.f32.gmra.mxu0 %v286
    %v445 = vpop.f32.mrf.mxu0
    %v446 = vadd.f32 %v381, %v445
    %447 = vdwg.mxu0
    %v448 = vmax.f32 %v401, 0.0
    %v449 = vmax.f32 %v404, 0.0
    %v450 = vmax.f32 %v407, 0.0
    %v451 = vmax.f32 %v410, 0.0
    %v452 = vmax.f32 %v413, 0.0
    %v453 = vmax.f32 %v416, 0.0
    %v454 = vmax.f32 %v419, 0.0
    %v455 = vmax.f32 %v422, 0.0
    %v456 = vmax.f32 %v425, 0.0
    %v457 = vmax.f32 %v428, 0.0
    %v458 = vmax.f32 %v431, 0.0
    %v459 = vmax.f32 %v434, 0.0
    %v460 = vmax.f32 %v437, 0.0
    %v461 = vmax.f32 %v440, 0.0
    %v462 = vmax.f32 %v443, 0.0
    %v463 = vmax.f32 %v446, 0.0
    %v464 = vld [vmem:[%s5] sm:$0xff]
    %v465 = vld [vmem:[%s5 + $0x8] sm:$0xff]
    %v466 = vld [vmem:[%s5 + $0x10] sm:$0xff]
    %v467 = vld [vmem:[%s5 + $0x18] sm:$0xff]
    %v468 = vld [vmem:[%s5 + $0x20] sm:$0xff]
    %v469 = vld [vmem:[%s5 + $0x28] sm:$0xff]
    %v470 = vld [vmem:[%s5 + $0x30] sm:$0xff]
    %v471 = vld [vmem:[%s5 + $0x38] sm:$0xff]
    %v472 = vld [vmem:[%s5 + $0x40] sm:$0xff]
    %v473 = vld [vmem:[%s5 + $0x48] sm:$0xff]
    %v474 = vld [vmem:[%s5 + $0x50] sm:$0xff]
    %v475 = vld [vmem:[%s5 + $0x58] sm:$0xff]
    %v476 = vld [vmem:[%s5 + $0x60] sm:$0xff]
    %v477 = vld [vmem:[%s5 + $0x68] sm:$0xff]
    %v478 = vld [vmem:[%s5 + $0x70] sm:$0xff]
    %v479 = vld [vmem:[%s5 + $0x78] sm:$0xff]
    %481 = vset.pattern.permute.xlu0 0
    %482 = vperm.xlu0 %481, %v464
    %v483 = vpop.permute.xlu0 %482
    %486 = vset.pattern.permute.xlu0 0
    %487 = vperm.xlu0 %486, %v465
    %v488 = vpop.permute.xlu0 %487
    %491 = vset.pattern.permute.xlu0 0
    %492 = vperm.xlu0 %491, %v466
    %v493 = vpop.permute.xlu0 %492
    %496 = vset.pattern.permute.xlu0 0
    %497 = vperm.xlu0 %496, %v467
    %v498 = vpop.permute.xlu0 %497
    %501 = vset.pattern.permute.xlu0 0
    %502 = vperm.xlu0 %501, %v468
    %v503 = vpop.permute.xlu0 %502
    %506 = vset.pattern.permute.xlu0 0
    %507 = vperm.xlu0 %506, %v469
    %v508 = vpop.permute.xlu0 %507
    %511 = vset.pattern.permute.xlu0 0
    %512 = vperm.xlu0 %511, %v470
    %v513 = vpop.permute.xlu0 %512
    %516 = vset.pattern.permute.xlu0 0
    %517 = vperm.xlu0 %516, %v471
    %v518 = vpop.permute.xlu0 %517
    %521 = vset.pattern.permute.xlu0 0
    %522 = vperm.xlu0 %521, %v472
    %v523 = vpop.permute.xlu0 %522
    %526 = vset.pattern.permute.xlu0 0
    %527 = vperm.xlu0 %526, %v473
    %v528 = vpop.permute.xlu0 %527
    %531 = vset.pattern.permute.xlu0 0
    %532 = vperm.xlu0 %531, %v474
    %v533 = vpop.permute.xlu0 %532
    %536 = vset.pattern.permute.xlu0 0
    %537 = vperm.xlu0 %536, %v475
    %v538 = vpop.permute.xlu0 %537
    %541 = vset.pattern.permute.xlu0 0
    %542 = vperm.xlu0 %541, %v476
    %v543 = vpop.permute.xlu0 %542
    %546 = vset.pattern.permute.xlu0 0
    %547 = vperm.xlu0 %546, %v477
    %v548 = vpop.permute.xlu0 %547
    %551 = vset.pattern.permute.xlu0 0
    %552 = vperm.xlu0 %551, %v478
    %v553 = vpop.permute.xlu0 %552
    %556 = vset.pattern.permute.xlu0 0
    %557 = vperm.xlu0 %556, %v479
    %v558 = vpop.permute.xlu0 %557
    %v560 = vmul.f32 %v448, %v483
    %v561 = vmul.f32 %v449, %v488
    %v562 = vmul.f32 %v450, %v493
    %v563 = vmul.f32 %v451, %v498
    %v564 = vmul.f32 %v452, %v503
    %v565 = vmul.f32 %v453, %v508
    %v566 = vmul.f32 %v454, %v513
    %v567 = vmul.f32 %v455, %v518
    %v568 = vmul.f32 %v456, %v523
    %v569 = vmul.f32 %v457, %v528
    %v570 = vmul.f32 %v458, %v533
    %v571 = vmul.f32 %v459, %v538
    %v572 = vmul.f32 %v460, %v543
    %v573 = vmul.f32 %v461, %v548
    %v574 = vmul.f32 %v462, %v553
    %v575 = vmul.f32 %v463, %v558
    %v576 = vadd.f32 %v560, %v561
    %v577 = vadd.f32 %v576, %v562
    %v578 = vadd.f32 %v577, %v563
    %v579 = vadd.f32 %v578, %v564
    %v580 = vadd.f32 %v579, %v565
    %v581 = vadd.f32 %v580, %v566
    %v582 = vadd.f32 %v581, %v567
    %v583 = vadd.f32 %v582, %v568
    %v584 = vadd.f32 %v583, %v569
    %v585 = vadd.f32 %v584, %v570
    %v586 = vadd.f32 %v585, %v571
    %v587 = vadd.f32 %v586, %v572
    %v588 = vadd.f32 %v587, %v573
    %v589 = vadd.f32 %v588, %v574
    %v590 = vadd.f32 %v589, %v575
    %v591 = vrot.slane %v590, 4
    %v592 = vadd.f32 %v590, %v591
    %v593 = vrot.slane %v592, 2
    %v594 = vadd.f32 %v592, %v593
    %v595 = vrot.slane %v594, 1
    %v596 = vadd.f32 %v594, %v595
    %s597 = sld [smem:[#allocation2]]
    %v598 = vstv %s597
    %v599 = vadd.f32 %v596, %v598
    %v600 = vsub.f32 0.0, %v599
    %v601 = vmul.f32 %v600, 1.442695
    %v602 = vpow.pop %v601
    %v603 = vadd.f32 %v602, 1.0
    %v604 = vrcp.pop %v603
    %605 = vst [vmem:[#allocation3] sm:$0x1] %v604
    // Predicated region
    $region30: #{tpu_custom_call.1} parent=1 // pred_check
      _
    $region31: #{tpu_custom_call.1} parent=1 // pred_check_branch
      %607 = sbr.rel (0) target = $region33
    $region32: #{tpu_custom_call.1} parent=1 // pred_region
      %609 = vsyncadd [#allocation4], 0
      %s611 = sshll.u32 [#allocation3], 4
      %s612 = int_to_ptr.vmem [resolvable:$true] %s611
      %s613 = sshll.u32 %s7, 4
      %s614 = int_to_ptr.hbm [resolvable:$true] %s613
      %616 = dma.vmem_to_hbm [thread:$0]  %s612, 16, %s614, [#allocation4]
    $region33: #{tpu_custom_call.1} parent=1 // pred_fallthru
      _
    // Predicated region
    $region34: #{tpu_custom_call.1} parent=1 // pred_check
      _
    $region35: #{tpu_custom_call.1} parent=1 // pred_check_branch
      %618 = sbr.rel (0) target = $region37
    $region36: #{tpu_custom_call.1} parent=1 // pred_region
      %620 = dma.done [#allocation4], 16
    $region37: #{tpu_custom_call.1} parent=1 // pred_fallthru
      _
    %621 = vsyncpa [#allocation4], 1

</llo_original>
